<compile_context>
chip_gen: v7x
topology: tpu7x:2x2x1
jax: 0.10.0
libtpu: 0.0.40
codegen_flags: <defaults>
</compile_context>

<pallas_src>
import jax
import jax.numpy as jnp
from jax.experimental import pallas as pl
from jax.experimental.pallas import tpu as pltpu

_LANE = 128  # lane width; pad node and feature dims to multiples of this


def _round_up(x, m):
    return ((x + m - 1) // m) * m


def _gcn_fused_kernel(a_ref, h_ref, w_ref, b_ref, o_ref):
    """Fused GCN forward.

    a_ref: [Np, Np]      bf16   normalized adjacency (padded)
    h_ref: [Np, Fp]      bf16   input node features (padded)
    w_ref: [L, Fp, Fp]   bf16   per-layer weights (zero padded to common shape)
    b_ref: [L, 1, Fp]    f32    per-layer biases
    o_ref: [Np, Fp]      f32    lane-dense output (last layer activations)
    """
    num_layers = w_ref.shape[0]
    a = a_ref[...]                       # hoisted: loaded once, reused each layer
    h_bf16 = h_ref[...]
    out_f32 = None
    # Static (unrolled) layer loop: H stays resident, never touches HBM.
    # With all feature dims padded to a common Fp the A@(H@W) association is
    # FLOP-optimal (N*Fp*Fp + N*N*Fp either way).
    for i in range(num_layers):
        hw = jnp.dot(h_bf16, w_ref[i], preferred_element_type=jnp.float32)
        ahw = jnp.dot(a, hw.astype(jnp.bfloat16),
                      preferred_element_type=jnp.float32)
        out_f32 = jnp.maximum(ahw + b_ref[i], 0.0)     # f32 epilogue (VPU)
        h_bf16 = out_f32.astype(jnp.bfloat16)          # next layer's MXU operand
    o_ref[...] = out_f32


def gcn_forward(a_norm, h, params):
    """GCN.forward: one fused Pallas kernel over all GraphConv layers."""
    n, f_in = h.shape
    num_layers = len(params)
    f_dims = [f_in] + [w.shape[1] for (w, _) in params]
    f_out = f_dims[-1]
    f_pad = _round_up(max(f_dims), _LANE)
    n_pad = _round_up(n, _LANE)

    # One-time padding + bf16 cast (hoisted out of the hot path).
    a_p = jnp.zeros((n_pad, n_pad), jnp.bfloat16)
    a_p = a_p.at[:n, :n].set(a_norm.astype(jnp.bfloat16))
    h_p = jnp.zeros((n_pad, f_pad), jnp.bfloat16)
    h_p = h_p.at[:n, :f_in].set(h.astype(jnp.bfloat16))
    w_stack = jnp.zeros((num_layers, f_pad, f_pad), jnp.bfloat16)
    b_stack = jnp.zeros((num_layers, 1, f_pad), jnp.float32)
    for i, (w, b) in enumerate(params):
        fi, fo = w.shape
        w_stack = w_stack.at[i, :fi, :fo].set(w.astype(jnp.bfloat16))
        b_stack = b_stack.at[i, 0, :fo].set(b.astype(jnp.float32))

    vmem = pl.BlockSpec(memory_space=pltpu.MemorySpace.VMEM)
    out_padded = pl.pallas_call(
        _gcn_fused_kernel,
        out_shape=jax.ShapeDtypeStruct((n_pad, f_pad), jnp.float32),
        in_specs=[vmem, vmem, vmem, vmem],
        out_specs=vmem,
        compiler_params=pltpu.CompilerParams(vmem_limit_bytes=64 * 1024 * 1024),
    )(a_p, h_p, w_stack, b_stack)
    return out_padded[:n, :f_out]


def normalize_adjacency(adj):
    """A_hat = D^{-1/2} (A + I) D^{-1/2}  (symmetric 'both' normalization)."""
    n = adj.shape[0]
    a = adj + jnp.eye(n, dtype=adj.dtype)          # add self-loops
    deg = jnp.sum(a, axis=1)
    d_inv_sqrt = jnp.where(deg > 0, 1.0 / jnp.sqrt(deg), 0.0)
    return a * d_inv_sqrt[:, None] * d_inv_sqrt[None, :]


def init_gcn_params(key, in_feats, out_feats, hidden_size, num_layers):
    """Deterministic Glorot-uniform weights + zero bias for each GraphConv."""
    dims = [in_feats] + [hidden_size] * (num_layers - 1) + [out_feats]
    params = []
    for i in range(num_layers):
        key, sub = jax.random.split(key)
        fan_in, fan_out = dims[i], dims[i + 1]
        limit = jnp.sqrt(6.0 / (fan_in + fan_out))
        w = jax.random.uniform(sub, (fan_in, fan_out), jnp.float32, -limit, limit)
        b = jnp.zeros((fan_out,), jnp.float32)
        params.append((w, b))
    return params


def gcn_reference(a_norm, h, params):
    """Pure-jnp f32 reference for validation."""
    for (w, b) in params:
        h = jnp.maximum(a_norm @ (h @ w) + b[None, :], 0.0)
    return h


if __name__ == "__main__":
    key = jax.random.PRNGKey(0)

    # Small synthetic graph / features.
    num_nodes = 16
    in_feats = 8
    hidden_size = 32
    out_feats = 8
    num_layers = 3

    k_adj, k_feat, k_params = jax.random.split(key, 3)

    # Random symmetric 0/1 adjacency (undirected graph, no self-loops yet).
    raw = jax.random.uniform(k_adj, (num_nodes, num_nodes))
    adj = (raw + raw.T > 1.2).astype(jnp.float32)
    adj = adj * (1.0 - jnp.eye(num_nodes, dtype=jnp.float32))
    a_norm = normalize_adjacency(adj)

    h0 = jax.random.normal(k_feat, (num_nodes, in_feats), jnp.float32)
    params = init_gcn_params(k_params, in_feats, out_feats, hidden_size, num_layers)

    out = gcn_forward(a_norm, h0, params)
    out = jax.block_until_ready(out)

    ref = gcn_reference(a_norm, h0, params)
    assert out.shape == (num_nodes, out_feats)
    # bf16 MXU operands (f32 accumulation) vs f32 reference -> loose tolerance.
    assert jnp.allclose(out, ref, atol=5e-2, rtol=5e-2), "mismatch vs jnp reference"

    print("KERNEL_OK")
</pallas_src>

<mosaic_0001>
module attributes {stable_mosaic.version = 11 : i64} {
  func.func @_gcn_fused_kernel(%arg0: memref<128x128xbf16, #tpu.memory_space<vmem>>, %arg1: memref<128x128xbf16, #tpu.memory_space<vmem>>, %arg2: memref<3x128x128xbf16, #tpu.memory_space<vmem>>, %arg3: memref<3x1x128xf32, #tpu.memory_space<vmem>>, %arg4: memref<128x128xf32, #tpu.memory_space<vmem>>) attributes {dimension_semantics = [], scalar_prefetch = 0 : i64, scratch_operands = 0 : i64, tpu.core_type = #tpu.core_type<tc>} {
    %c0 = arith.constant 0 : index
    %c0_0 = arith.constant 0 : index
    %0 = vector.load %arg0[%c0, %c0_0] : memref<128x128xbf16, #tpu.memory_space<vmem>>, vector<128x128xbf16>
    %c0_1 = arith.constant 0 : index
    %c0_2 = arith.constant 0 : index
    %1 = vector.load %arg1[%c0_1, %c0_2] : memref<128x128xbf16, #tpu.memory_space<vmem>>, vector<128x128xbf16>
    %c0_3 = arith.constant 0 : index
    %c0_4 = arith.constant 0 : index
    %c0_5 = arith.constant 0 : index
    %2 = vector.load %arg2[%c0_3, %c0_4, %c0_5] : memref<3x128x128xbf16, #tpu.memory_space<vmem>>, vector<1x128x128xbf16>
    %3 = vector.shape_cast %2 : vector<1x128x128xbf16> to vector<128x128xbf16>
    %cst = arith.constant dense<0.000000e+00> : vector<128x128xf32>
    %4 = tpu.matmul %1, %3, %cst {dimension_numbers = #tpu.dot_dimension_numbers<[1], [0], [0], [1], [0, 0, 1, 1], [], []>} : vector<128x128xbf16>, vector<128x128xbf16>, vector<128x128xf32> -> vector<128x128xf32>
    %5 = arith.truncf %4 : vector<128x128xf32> to vector<128x128xbf16>
    %cst_6 = arith.constant dense<0.000000e+00> : vector<128x128xf32>
    %6 = tpu.matmul %0, %5, %cst_6 {dimension_numbers = #tpu.dot_dimension_numbers<[1], [0], [0], [1], [0, 0, 1, 1], [], []>} : vector<128x128xbf16>, vector<128x128xbf16>, vector<128x128xf32> -> vector<128x128xf32>
    %c0_7 = arith.constant 0 : index
    %c0_8 = arith.constant 0 : index
    %c0_9 = arith.constant 0 : index
    %7 = vector.load %arg3[%c0_7, %c0_8, %c0_9] : memref<3x1x128xf32, #tpu.memory_space<vmem>>, vector<1x1x128xf32>
    %8 = vector.shape_cast %7 : vector<1x1x128xf32> to vector<1x128xf32>
    %9 = vector.broadcast %8 : vector<1x128xf32> to vector<128x128xf32>
    %10 = arith.addf %6, %9 : vector<128x128xf32>
    %cst_10 = arith.constant 0.000000e+00 : f32
    %11 = vector.broadcast %cst_10 : f32 to vector<128x128xf32>
    %12 = arith.maximumf %10, %11 : vector<128x128xf32>
    %13 = arith.truncf %12 : vector<128x128xf32> to vector<128x128xbf16>
    %c1 = arith.constant 1 : index
    %c0_11 = arith.constant 0 : index
    %c0_12 = arith.constant 0 : index
    %14 = vector.load %arg2[%c1, %c0_11, %c0_12] : memref<3x128x128xbf16, #tpu.memory_space<vmem>>, vector<1x128x128xbf16>
    %15 = vector.shape_cast %14 : vector<1x128x128xbf16> to vector<128x128xbf16>
    %cst_13 = arith.constant dense<0.000000e+00> : vector<128x128xf32>
    %16 = tpu.matmul %13, %15, %cst_13 {dimension_numbers = #tpu.dot_dimension_numbers<[1], [0], [0], [1], [0, 0, 1, 1], [], []>} : vector<128x128xbf16>, vector<128x128xbf16>, vector<128x128xf32> -> vector<128x128xf32>
    %17 = arith.truncf %16 : vector<128x128xf32> to vector<128x128xbf16>
    %cst_14 = arith.constant dense<0.000000e+00> : vector<128x128xf32>
    %18 = tpu.matmul %0, %17, %cst_14 {dimension_numbers = #tpu.dot_dimension_numbers<[1], [0], [0], [1], [0, 0, 1, 1], [], []>} : vector<128x128xbf16>, vector<128x128xbf16>, vector<128x128xf32> -> vector<128x128xf32>
    %c1_15 = arith.constant 1 : index
    %c0_16 = arith.constant 0 : index
    %c0_17 = arith.constant 0 : index
    %19 = vector.load %arg3[%c1_15, %c0_16, %c0_17] : memref<3x1x128xf32, #tpu.memory_space<vmem>>, vector<1x1x128xf32>
    %20 = vector.shape_cast %19 : vector<1x1x128xf32> to vector<1x128xf32>
    %21 = vector.broadcast %20 : vector<1x128xf32> to vector<128x128xf32>
    %22 = arith.addf %18, %21 : vector<128x128xf32>
    %cst_18 = arith.constant 0.000000e+00 : f32
    %23 = vector.broadcast %cst_18 : f32 to vector<128x128xf32>
    %24 = arith.maximumf %22, %23 : vector<128x128xf32>
    %25 = arith.truncf %24 : vector<128x128xf32> to vector<128x128xbf16>
    %c2 = arith.constant 2 : index
    %c0_19 = arith.constant 0 : index
    %c0_20 = arith.constant 0 : index
    %26 = vector.load %arg2[%c2, %c0_19, %c0_20] : memref<3x128x128xbf16, #tpu.memory_space<vmem>>, vector<1x128x128xbf16>
    %27 = vector.shape_cast %26 : vector<1x128x128xbf16> to vector<128x128xbf16>
    %cst_21 = arith.constant dense<0.000000e+00> : vector<128x128xf32>
    %28 = tpu.matmul %25, %27, %cst_21 {dimension_numbers = #tpu.dot_dimension_numbers<[1], [0], [0], [1], [0, 0, 1, 1], [], []>} : vector<128x128xbf16>, vector<128x128xbf16>, vector<128x128xf32> -> vector<128x128xf32>
    %29 = arith.truncf %28 : vector<128x128xf32> to vector<128x128xbf16>
    %cst_22 = arith.constant dense<0.000000e+00> : vector<128x128xf32>
    %30 = tpu.matmul %0, %29, %cst_22 {dimension_numbers = #tpu.dot_dimension_numbers<[1], [0], [0], [1], [0, 0, 1, 1], [], []>} : vector<128x128xbf16>, vector<128x128xbf16>, vector<128x128xf32> -> vector<128x128xf32>
    %c2_23 = arith.constant 2 : index
    %c0_24 = arith.constant 0 : index
    %c0_25 = arith.constant 0 : index
    %31 = vector.load %arg3[%c2_23, %c0_24, %c0_25] : memref<3x1x128xf32, #tpu.memory_space<vmem>>, vector<1x1x128xf32>
    %32 = vector.shape_cast %31 : vector<1x1x128xf32> to vector<1x128xf32>
    %33 = vector.broadcast %32 : vector<1x128xf32> to vector<128x128xf32>
    %34 = arith.addf %30, %33 : vector<128x128xf32>
    %cst_26 = arith.constant 0.000000e+00 : f32
    %35 = vector.broadcast %cst_26 : f32 to vector<128x128xf32>
    %36 = arith.maximumf %34, %35 : vector<128x128xf32>
    %c0_27 = arith.constant 0 : index
    %c0_28 = arith.constant 0 : index
    %37 = vector.load %arg4[%c0_27, %c0_28] : memref<128x128xf32, #tpu.memory_space<vmem>>, vector<128x128xf32>
    tpu.vector_store %arg4[%c0_27, %c0_28], %36 {strides = array<i32>} : memref<128x128xf32, #tpu.memory_space<vmem>>, vector<128x128xf32>,
    return
  }
}

</mosaic_0001>

<llo_original>
// kernel: tpu_custom_call.1
$region0: #{tpu_custom_call.1}
  #allocation0 [shape = 'u32[]', space=smem, size = 0x4, offset = 0x4, fixed_abs, tag = 'smem constant byte address 0x4 - core index']
  #allocation1 [shape = 'u32[144,128]{1,0:T(1,128)}', space=vmem, size = 0x12000, scoped, tag = 'internal scratch']
  %s0 = inlined_call_operand.hbm [shape: bf16[128,128], index: 0, kind: input, shape index: {}]
  %s1 = inlined_call_operand.hbm [shape: bf16[128,128], index: 1, kind: input, shape index: {}]
  %s2 = inlined_call_operand.hbm [shape: bf16[3,128,128], index: 2, kind: input, shape index: {}]
  %s3 = inlined_call_operand.hbm [shape: f32[3,1,128], index: 3, kind: input, shape index: {}]
  %s4 = inlined_call_operand.hbm [shape: f32[128,128], index: 4, kind: output, shape index: {}]
  %s5 = sld [smem:[#allocation0]]
  $region42: #{tpu_custom_call.1} parent=0
    _
  %s7 = ssub.s32 1, %s5
  %s8 = scalar_select 0, %s7, %s5
  $region1: #{tpu_custom_call.1} parent=0
    #allocation2 [shape = 'u8[32768]{0}', space=vmem, size = 0x8000, scoped, tag = 'input window, operand 0, single buffered']
    #allocation3 [shape = 's32[1]{0}', space=sflag, size = 0x4, scoped, tag = 'scoped memory for tpu_custom_call.1']
    #allocation4 [shape = 's32[1]{0}', space=sflag, size = 0x4, scoped, tag = 'scoped memory for tpu_custom_call.1']
    #allocation5 [shape = 'u8[32768]{0}', space=vmem, size = 0x8000, scoped, tag = 'input window, operand 1, single buffered']
    #allocation6 [shape = 's32[1]{0}', space=sflag, size = 0x4, scoped, tag = 'scoped memory for tpu_custom_call.1']
    #allocation7 [shape = 'u8[98304]{0}', space=vmem, size = 0x18000, scoped, tag = 'input window, operand 2, single buffered']
    #allocation8 [shape = 'u8[1536]{0}', space=vmem, size = 0x800, scoped, tag = 'input window, operand 3, single buffered']
    #allocation9 [shape = 's32[1]{0}', space=sflag, size = 0x4, scoped, tag = 'scoped memory for tpu_custom_call.1']
    #allocation10 [shape = 'u8[65536]{0}', space=vmem, size = 0x10000, scoped, tag = 'output window, operand 0, single buffered']
    %9 = vsyncpa [#allocation3], 0
    %10 = vsyncpa [#allocation6], 0
    %11 = vsyncpa [#allocation9], 0
    %12 = vsyncpa [#allocation4], 0
    // Predicated region
    $region2: #{tpu_custom_call.1} parent=1 // pred_check
      _
    $region3: #{tpu_custom_call.1} parent=1 // pred_check_branch
      %14 = sbr.rel (0) target = $region5
    $region4: #{tpu_custom_call.1} parent=1 // pred_region
      %s16 = ssub.s32 1024, 1024
      %17 = vsyncadd [#allocation3], %s16
      %s18 = sshll.u32 [#allocation2], 4
      %s19 = int_to_ptr.vmem [resolvable:$true] %s18
      %24 = dma.hbm_to_vmem [thread:$0]  %s0, 1024, %s19, [#allocation3], 64, 64, 4
    $region5: #{tpu_custom_call.1} parent=1 // pred_fallthru
      _
    // Predicated region
    $region6: #{tpu_custom_call.1} parent=1 // pred_check
      _
    $region7: #{tpu_custom_call.1} parent=1 // pred_check_branch
      %26 = sbr.rel (0) target = $region9
    $region8: #{tpu_custom_call.1} parent=1 // pred_region
      %s28 = ssub.s32 1024, 1024
      %29 = vsyncadd [#allocation6], %s28
      %s30 = sshll.u32 [#allocation5], 4
      %s31 = int_to_ptr.vmem [resolvable:$true] %s30
      %36 = dma.hbm_to_vmem [thread:$0]  %s1, 1024, %s31, [#allocation6], 64, 64, 4
    $region9: #{tpu_custom_call.1} parent=1 // pred_fallthru
      _
    // Predicated region
    $region10: #{tpu_custom_call.1} parent=1 // pred_check
      _
    $region11: #{tpu_custom_call.1} parent=1 // pred_check_branch
      %38 = sbr.rel (0) target = $region13
    $region12: #{tpu_custom_call.1} parent=1 // pred_region
      %s40 = ssub.s32 3072, 3072
      %41 = vsyncadd [#allocation6], %s40
      %s42 = sshll.u32 [#allocation7], 4
      %s43 = int_to_ptr.vmem [resolvable:$true] %s42
      %48 = dma.hbm_to_vmem [thread:$0]  %s2, 3072, %s43, [#allocation6], 64, 64, 4
    $region13: #{tpu_custom_call.1} parent=1 // pred_fallthru
      _
    // Predicated region
    $region14: #{tpu_custom_call.1} parent=1 // pred_check
      _
    $region15: #{tpu_custom_call.1} parent=1 // pred_check_branch
      %50 = sbr.rel (0) target = $region17
    $region16: #{tpu_custom_call.1} parent=1 // pred_region
      %s52 = ssub.s32 48, 48
      %53 = vsyncadd [#allocation9], %s52
      %s54 = sshll.u32 [#allocation8], 4
      %s55 = int_to_ptr.vmem [resolvable:$true] %s54
      %60 = dma.hbm_to_vmem [thread:$0]  %s3, 48, %s55, [#allocation9], 16, 16, 1
    $region17: #{tpu_custom_call.1} parent=1 // pred_fallthru
      _
    // Predicated region
    $region18: #{tpu_custom_call.1} parent=1 // pred_check
      _
    $region19: #{tpu_custom_call.1} parent=1 // pred_check_branch
      %62 = sbr.rel (0) target = $region21
    $region20: #{tpu_custom_call.1} parent=1 // pred_region
      %63 = dma.done [#allocation3], 1024
    $region21: #{tpu_custom_call.1} parent=1 // pred_fallthru
      _
    // Predicated region
    $region22: #{tpu_custom_call.1} parent=1 // pred_check
      _
    $region23: #{tpu_custom_call.1} parent=1 // pred_check_branch
      %65 = sbr.rel (0) target = $region25
    $region24: #{tpu_custom_call.1} parent=1 // pred_region
      %66 = dma.done [#allocation6], 1024
    $region25: #{tpu_custom_call.1} parent=1 // pred_fallthru
      _
    // Predicated region
    $region26: #{tpu_custom_call.1} parent=1 // pred_check
      _
    $region27: #{tpu_custom_call.1} parent=1 // pred_check_branch
      %68 = sbr.rel (0) target = $region29
    $region28: #{tpu_custom_call.1} parent=1 // pred_region
      %69 = dma.done [#allocation6], 3072
    $region29: #{tpu_custom_call.1} parent=1 // pred_fallthru
      _
    // Predicated region
    $region30: #{tpu_custom_call.1} parent=1 // pred_check
      _
    $region31: #{tpu_custom_call.1} parent=1 // pred_check_branch
      %71 = sbr.rel (0) target = $region33
    $region32: #{tpu_custom_call.1} parent=1 // pred_region
      %72 = dma.done [#allocation9], 48
    $region33: #{tpu_custom_call.1} parent=1 // pred_fallthru
      _
    %v74 = vld [vmem:[#allocation2] sm:$0xf]
    %v75 = vld [vmem:[#allocation2 + $0x4] sm:$0xf]
    %v76 = vld [vmem:[#allocation2 + $0x8] sm:$0xf]
    %v77 = vld [vmem:[#allocation2 + $0xc] sm:$0xf]
    %v78 = vld [vmem:[#allocation2 + $0x10] sm:$0xf]
    %v79 = vld [vmem:[#allocation2 + $0x14] sm:$0xf]
    %v80 = vld [vmem:[#allocation2 + $0x18] sm:$0xf]
    %v81 = vld [vmem:[#allocation2 + $0x1c] sm:$0xf]
    %v82 = vld [vmem:[#allocation2 + $0x20] sm:$0xf]
    %v83 = vld [vmem:[#allocation2 + $0x24] sm:$0xf]
    %v84 = vld [vmem:[#allocation2 + $0x28] sm:$0xf]
    %v85 = vld [vmem:[#allocation2 + $0x2c] sm:$0xf]
    %v86 = vld [vmem:[#allocation2 + $0x30] sm:$0xf]
    %v87 = vld [vmem:[#allocation2 + $0x34] sm:$0xf]
    %v88 = vld [vmem:[#allocation2 + $0x38] sm:$0xf]
    %v89 = vld [vmem:[#allocation2 + $0x3c] sm:$0xf]
    %v90 = vld [vmem:[#allocation5] sm:$0xf]
    %v91 = vld [vmem:[#allocation5 + $0x4] sm:$0xf]
    %v92 = vld [vmem:[#allocation5 + $0x8] sm:$0xf]
    %v93 = vld [vmem:[#allocation5 + $0xc] sm:$0xf]
    %v94 = vld [vmem:[#allocation5 + $0x10] sm:$0xf]
    %v95 = vld [vmem:[#allocation5 + $0x14] sm:$0xf]
    %v96 = vld [vmem:[#allocation5 + $0x18] sm:$0xf]
    %v97 = vld [vmem:[#allocation5 + $0x1c] sm:$0xf]
    %v98 = vld [vmem:[#allocation5 + $0x20] sm:$0xf]
    %v99 = vld [vmem:[#allocation5 + $0x24] sm:$0xf]
    %v100 = vld [vmem:[#allocation5 + $0x28] sm:$0xf]
    %v101 = vld [vmem:[#allocation5 + $0x2c] sm:$0xf]
    %v102 = vld [vmem:[#allocation5 + $0x30] sm:$0xf]
    %v103 = vld [vmem:[#allocation5 + $0x34] sm:$0xf]
    %v104 = vld [vmem:[#allocation5 + $0x38] sm:$0xf]
    %v105 = vld [vmem:[#allocation5 + $0x3c] sm:$0xf]
    %v106 = vld [vmem:[#allocation7] sm:$0xf]
    %v107 = vld [vmem:[#allocation7 + $0x4] sm:$0xf]
    %v108 = vld [vmem:[#allocation7 + $0x8] sm:$0xf]
    %v109 = vld [vmem:[#allocation7 + $0xc] sm:$0xf]
    %v110 = vld [vmem:[#allocation7 + $0x10] sm:$0xf]
    %v111 = vld [vmem:[#allocation7 + $0x14] sm:$0xf]
    %v112 = vld [vmem:[#allocation7 + $0x18] sm:$0xf]
    %v113 = vld [vmem:[#allocation7 + $0x1c] sm:$0xf]
    %v114 = vld [vmem:[#allocation7 + $0x20] sm:$0xf]
    %v115 = vld [vmem:[#allocation7 + $0x24] sm:$0xf]
    %v116 = vld [vmem:[#allocation7 + $0x28] sm:$0xf]
    %v117 = vld [vmem:[#allocation7 + $0x2c] sm:$0xf]
    %v118 = vld [vmem:[#allocation7 + $0x30] sm:$0xf]
    %v119 = vld [vmem:[#allocation7 + $0x34] sm:$0xf]
    %v120 = vld [vmem:[#allocation7 + $0x38] sm:$0xf]
    %v121 = vld [vmem:[#allocation7 + $0x3c] sm:$0xf]
    %v138 = vunpack.c.l.b16 %v90
    %v139 = vunpack.c.l.b16 %v91
    %v140 = vunpack.c.l.b16 %v92
    %v141 = vunpack.c.l.b16 %v93
    %v142 = vunpack.c.l.b16 %v94
    %v143 = vunpack.c.l.b16 %v95
    %v144 = vunpack.c.l.b16 %v96
    %v145 = vunpack.c.l.b16 %v97
    %v146 = vunpack.c.l.b16 %v98
    %v147 = vunpack.c.l.b16 %v99
    %v148 = vunpack.c.l.b16 %v100
    %v149 = vunpack.c.l.b16 %v101
    %v150 = vunpack.c.l.b16 %v102
    %v151 = vunpack.c.l.b16 %v103
    %v152 = vunpack.c.l.b16 %v104
    %v153 = vunpack.c.l.b16 %v105
    %v154 = vpack.c.b16 %v139, %v138
    %v155 = vpack.c.b16 %v141, %v140
    %v156 = vpack.c.b16 %v143, %v142
    %v157 = vpack.c.b16 %v145, %v144
    %v158 = vpack.c.b16 %v147, %v146
    %v159 = vpack.c.b16 %v149, %v148
    %v160 = vpack.c.b16 %v151, %v150
    %v161 = vpack.c.b16 %v153, %v152
    %v186 = vunpack.c.l.b16 %v106
    %v187 = vunpack.c.l.b16 %v107
    %v188 = vunpack.c.l.b16 %v108
    %v189 = vunpack.c.l.b16 %v109
    %v190 = vunpack.c.l.b16 %v110
    %v191 = vunpack.c.l.b16 %v111
    %v192 = vunpack.c.l.b16 %v112
    %v193 = vunpack.c.l.b16 %v113
    %v194 = vunpack.c.l.b16 %v114
    %v195 = vunpack.c.l.b16 %v115
    %v196 = vunpack.c.l.b16 %v116
    %v197 = vunpack.c.l.b16 %v117
    %v198 = vunpack.c.l.b16 %v118
    %v199 = vunpack.c.l.b16 %v119
    %v200 = vunpack.c.l.b16 %v120
    %v201 = vunpack.c.l.b16 %v121
    %v202 = vpack.c.b16 %v187, %v186
    %v203 = vpack.c.b16 %v189, %v188
    %v204 = vpack.c.b16 %v191, %v190
    %v205 = vpack.c.b16 %v193, %v192
    %v206 = vpack.c.b16 %v195, %v194
    %v207 = vpack.c.b16 %v197, %v196
    %v208 = vpack.c.b16 %v199, %v198
    %v209 = vpack.c.b16 %v201, %v200
    %218 = vmatprep.subr.bf16.mxu0 0
    %219 = vmatpush1.bf16.msra.mxu0 %v202
    %220 = vmatprep.subr.bf16.mxu0 0
    %221 = vmatpush1.bf16.msra.mxu0 %v203
    %222 = vmatprep.subr.bf16.mxu0 0
    %223 = vmatpush1.bf16.msra.mxu0 %v204
    %224 = vmatprep.subr.bf16.mxu0 0
    %225 = vmatpush1.bf16.msra.mxu0 %v205
    %226 = vmatprep.subr.bf16.mxu0 0
    %227 = vmatpush1.bf16.msra.mxu0 %v206
    %228 = vmatprep.subr.bf16.mxu0 0
    %229 = vmatpush1.bf16.msra.mxu0 %v207
    %230 = vmatprep.subr.bf16.mxu0 0
    %231 = vmatpush1.bf16.msra.mxu0 %v208
    %232 = vmatprep.subr.bf16.mxu0 0
    %233 = vmatpush1.bf16.msra.mxu0 %v209
    %234 = vmatprep.subr.bf16.mxu0 0
    %235 = vmatpush1.bf16.msra.mxu0 0
    %236 = vmatprep.subr.bf16.mxu0 0
    %237 = vmatpush1.bf16.msra.mxu0 0
    %238 = vmatprep.subr.bf16.mxu0 0
    %239 = vmatpush1.bf16.msra.mxu0 0
    %240 = vmatprep.subr.bf16.mxu0 0
    %241 = vmatpush1.bf16.msra.mxu0 0
    %242 = vmatprep.subr.bf16.mxu0 0
    %243 = vmatpush1.bf16.msra.mxu0 0
    %244 = vmatprep.subr.bf16.mxu0 0
    %245 = vmatpush1.bf16.msra.mxu0 0
    %246 = vmatprep.subr.bf16.mxu0 0
    %247 = vmatpush1.bf16.msra.mxu0 0
    %248 = vmatprep.subr.bf16.mxu0 0
    %249 = vmatpush1.bf16.msra.mxu0 0
    %250 = vmatprep.mubr.bf16.mxu0 0
    %251 = vmatmul.mubr.bf16.gmra.mrb[0].mxu0 %v154
    %v252 = vpop.f32.mrb[0].mxu0
    %v253 = vadd.f32 0.0, %v252
    %v254 = vpop.f32.mrb[0].mxu0
    %v255 = vpop.f32.mrb[0].mxu0
    %v256 = vadd.f32 0.0, %v255
    %v257 = vpop.f32.mrb[0].mxu0
    %258 = vmatprep.mubr.bf16.mxu0 0
    %259 = vmatmul.mubr.bf16.gmra.mrb[0].mxu0 %v155
    %v260 = vpop.f32.mrb[0].mxu0
    %v261 = vadd.f32 0.0, %v260
    %v262 = vpop.f32.mrb[0].mxu0
    %v263 = vpop.f32.mrb[0].mxu0
    %v264 = vadd.f32 0.0, %v263
    %v265 = vpop.f32.mrb[0].mxu0
    %266 = vmatprep.mubr.bf16.mxu0 0
    %267 = vmatmul.mubr.bf16.gmra.mrb[0].mxu0 %v156
    %v268 = vpop.f32.mrb[0].mxu0
    %v269 = vadd.f32 0.0, %v268
    %v270 = vpop.f32.mrb[0].mxu0
    %v271 = vpop.f32.mrb[0].mxu0
    %v272 = vadd.f32 0.0, %v271
    %v273 = vpop.f32.mrb[0].mxu0
    %274 = vmatprep.mubr.bf16.mxu0 0
    %275 = vmatmul.mubr.bf16.gmra.mrb[0].mxu0 %v157
    %v276 = vpop.f32.mrb[0].mxu0
    %v277 = vadd.f32 0.0, %v276
    %v278 = vpop.f32.mrb[0].mxu0
    %v279 = vpop.f32.mrb[0].mxu0
    %v280 = vadd.f32 0.0, %v279
    %v281 = vpop.f32.mrb[0].mxu0
    %282 = vmatprep.mubr.bf16.mxu0 0
    %283 = vmatmul.mubr.bf16.gmra.mrb[0].mxu0 %v158
    %v284 = vpop.f32.mrb[0].mxu0
    %v285 = vadd.f32 0.0, %v284
    %v286 = vpop.f32.mrb[0].mxu0
    %v287 = vpop.f32.mrb[0].mxu0
    %v288 = vadd.f32 0.0, %v287
    %v289 = vpop.f32.mrb[0].mxu0
    %290 = vmatprep.mubr.bf16.mxu0 0
    %291 = vmatmul.mubr.bf16.gmra.mrb[0].mxu0 %v159
    %v292 = vpop.f32.mrb[0].mxu0
    %v293 = vadd.f32 0.0, %v292
    %v294 = vpop.f32.mrb[0].mxu0
    %v295 = vpop.f32.mrb[0].mxu0
    %v296 = vadd.f32 0.0, %v295
    %v297 = vpop.f32.mrb[0].mxu0
    %298 = vmatprep.mubr.bf16.mxu0 0
    %299 = vmatmul.mubr.bf16.gmra.mrb[0].mxu0 %v160
    %v300 = vpop.f32.mrb[0].mxu0
    %v301 = vadd.f32 0.0, %v300
    %v302 = vpop.f32.mrb[0].mxu0
    %v303 = vpop.f32.mrb[0].mxu0
    %v304 = vadd.f32 0.0, %v303
    %v305 = vpop.f32.mrb[0].mxu0
    %306 = vmatprep.mubr.bf16.mxu0 0
    %307 = vmatmul.mubr.bf16.gmra.mrb[0].mxu0 %v161
    %v308 = vpop.f32.mrb[0].mxu0
    %v309 = vadd.f32 0.0, %v308
    %v310 = vpop.f32.mrb[0].mxu0
    %v311 = vpop.f32.mrb[0].mxu0
    %v312 = vadd.f32 0.0, %v311
    %v313 = vpop.f32.mrb[0].mxu0
    %314 = vdwg.mxu0
    %v315 = vpack.c.bf16 %v256, %v253
    %v316 = vpack.c.bf16 %v264, %v261
    %v317 = vpack.c.bf16 %v272, %v269
    %v318 = vpack.c.bf16 %v280, %v277
    %v319 = vpack.c.bf16 %v288, %v285
    %v320 = vpack.c.bf16 %v296, %v293
    %v321 = vpack.c.bf16 %v304, %v301
    %v322 = vpack.c.bf16 %v312, %v309
    %v323 = vld [vmem:[#allocation8] sm:$0x1]
    %v325 = vlaneseq
    %v326 = vshrl.u32 %v325, 7
    %v327 = vsub.s32 0, %v326
    %v328 = vrot.slane %v323, %v327
    %v346 = vunpack.c.l.b16 %v74
    %v347 = vunpack.c.l.b16 %v75
    %v348 = vunpack.c.l.b16 %v76
    %v349 = vunpack.c.l.b16 %v77
    %v350 = vunpack.c.l.b16 %v78
    %v351 = vunpack.c.l.b16 %v79
    %v352 = vunpack.c.l.b16 %v80
    %v353 = vunpack.c.l.b16 %v81
    %v354 = vunpack.c.l.b16 %v82
    %v355 = vunpack.c.l.b16 %v83
    %v356 = vunpack.c.l.b16 %v84
    %v357 = vunpack.c.l.b16 %v85
    %v358 = vunpack.c.l.b16 %v86
    %v359 = vunpack.c.l.b16 %v87
    %v360 = vunpack.c.l.b16 %v88
    %v361 = vunpack.c.l.b16 %v89
    %v362 = vpack.c.b16 %v347, %v346
    %v363 = vpack.c.b16 %v349, %v348
    %v364 = vpack.c.b16 %v351, %v350
    %v365 = vpack.c.b16 %v353, %v352
    %v366 = vpack.c.b16 %v355, %v354
    %v367 = vpack.c.b16 %v357, %v356
    %v368 = vpack.c.b16 %v359, %v358
    %v369 = vpack.c.b16 %v361, %v360
    %378 = vmatprep.subr.bf16.mxu0 0
    %379 = vmatpush1.bf16.msra.mxu0 %v315
    %380 = vmatprep.subr.bf16.mxu0 0
    %381 = vmatpush1.bf16.msra.mxu0 %v316
    %382 = vmatprep.subr.bf16.mxu0 0
    %383 = vmatpush1.bf16.msra.mxu0 %v317
    %384 = vmatprep.subr.bf16.mxu0 0
    %385 = vmatpush1.bf16.msra.mxu0 %v318
    %386 = vmatprep.subr.bf16.mxu0 0
    %387 = vmatpush1.bf16.msra.mxu0 %v319
    %388 = vmatprep.subr.bf16.mxu0 0
    %389 = vmatpush1.bf16.msra.mxu0 %v320
    %390 = vmatprep.subr.bf16.mxu0 0
    %391 = vmatpush1.bf16.msra.mxu0 %v321
    %392 = vmatprep.subr.bf16.mxu0 0
    %393 = vmatpush1.bf16.msra.mxu0 %v322
    %394 = vmatprep.subr.bf16.mxu0 0
    %395 = vmatpush1.bf16.msra.mxu0 0
    %396 = vmatprep.subr.bf16.mxu0 0
    %397 = vmatpush1.bf16.msra.mxu0 0
    %398 = vmatprep.subr.bf16.mxu0 0
    %399 = vmatpush1.bf16.msra.mxu0 0
    %400 = vmatprep.subr.bf16.mxu0 0
    %401 = vmatpush1.bf16.msra.mxu0 0
    %402 = vmatprep.subr.bf16.mxu0 0
    %403 = vmatpush1.bf16.msra.mxu0 0
    %404 = vmatprep.subr.bf16.mxu0 0
    %405 = vmatpush1.bf16.msra.mxu0 0
    %406 = vmatprep.subr.bf16.mxu0 0
    %407 = vmatpush1.bf16.msra.mxu0 0
    %408 = vmatprep.subr.bf16.mxu0 0
    %409 = vmatpush1.bf16.msra.mxu0 0
    %410 = vmatprep.mubr.bf16.mxu0 0
    %411 = vmatmul.mubr.bf16.gmra.mrb[0].mxu0 %v362
    %v412 = vpop.f32.mrb[0].mxu0
    %v413 = vadd.f32 %v328, %v412
    %v414 = vpop.f32.mrb[0].mxu0
    %v415 = vpop.f32.mrb[0].mxu0
    %v416 = vadd.f32 %v328, %v415
    %v417 = vpop.f32.mrb[0].mxu0
    %418 = vmatprep.mubr.bf16.mxu0 0
    %419 = vmatmul.mubr.bf16.gmra.mrb[0].mxu0 %v363
    %v420 = vpop.f32.mrb[0].mxu0
    %v421 = vadd.f32 %v328, %v420
    %v422 = vpop.f32.mrb[0].mxu0
    %v423 = vpop.f32.mrb[0].mxu0
    %v424 = vadd.f32 %v328, %v423
    %v425 = vpop.f32.mrb[0].mxu0
    %426 = vmatprep.mubr.bf16.mxu0 0
    %427 = vmatmul.mubr.bf16.gmra.mrb[0].mxu0 %v364
    %v428 = vpop.f32.mrb[0].mxu0
    %v429 = vadd.f32 %v328, %v428
    %v430 = vpop.f32.mrb[0].mxu0
    %v431 = vpop.f32.mrb[0].mxu0
    %v432 = vadd.f32 %v328, %v431
    %v433 = vpop.f32.mrb[0].mxu0
    %434 = vmatprep.mubr.bf16.mxu0 0
    %435 = vmatmul.mubr.bf16.gmra.mrb[0].mxu0 %v365
    %v436 = vpop.f32.mrb[0].mxu0
    %v437 = vadd.f32 %v328, %v436
    %v438 = vpop.f32.mrb[0].mxu0
    %v439 = vpop.f32.mrb[0].mxu0
    %v440 = vadd.f32 %v328, %v439
    %v441 = vpop.f32.mrb[0].mxu0
    %442 = vmatprep.mubr.bf16.mxu0 0
    %443 = vmatmul.mubr.bf16.gmra.mrb[0].mxu0 %v366
    %v444 = vpop.f32.mrb[0].mxu0
    %v445 = vadd.f32 %v328, %v444
    %v446 = vpop.f32.mrb[0].mxu0
    %v447 = vpop.f32.mrb[0].mxu0
    %v448 = vadd.f32 %v328, %v447
    %v449 = vpop.f32.mrb[0].mxu0
    %450 = vmatprep.mubr.bf16.mxu0 0
    %451 = vmatmul.mubr.bf16.gmra.mrb[0].mxu0 %v367
    %v452 = vpop.f32.mrb[0].mxu0
    %v453 = vadd.f32 %v328, %v452
    %v454 = vpop.f32.mrb[0].mxu0
    %v455 = vpop.f32.mrb[0].mxu0
    %v456 = vadd.f32 %v328, %v455
    %v457 = vpop.f32.mrb[0].mxu0
    %458 = vmatprep.mubr.bf16.mxu0 0
    %459 = vmatmul.mubr.bf16.gmra.mrb[0].mxu0 %v368
    %v460 = vpop.f32.mrb[0].mxu0
    %v461 = vadd.f32 %v328, %v460
    %v462 = vpop.f32.mrb[0].mxu0
    %v463 = vpop.f32.mrb[0].mxu0
    %v464 = vadd.f32 %v328, %v463
    %v465 = vpop.f32.mrb[0].mxu0
    %466 = vmatprep.mubr.bf16.mxu0 0
    %467 = vmatmul.mubr.bf16.gmra.mrb[0].mxu0 %v369
    %v468 = vpop.f32.mrb[0].mxu0
    %v469 = vadd.f32 %v328, %v468
    %v470 = vpop.f32.mrb[0].mxu0
    %v471 = vpop.f32.mrb[0].mxu0
    %v472 = vadd.f32 %v328, %v471
    %v473 = vpop.f32.mrb[0].mxu0
    %474 = vdwg.mxu0
    %v475 = vmax.f32 %v413, 0.0
    %v476 = vmax.f32 %v416, 0.0
    %v477 = vmax.f32 %v421, 0.0
    %v478 = vmax.f32 %v424, 0.0
    %v479 = vmax.f32 %v429, 0.0
    %v480 = vmax.f32 %v432, 0.0
    %v481 = vmax.f32 %v437, 0.0
    %v482 = vmax.f32 %v440, 0.0
    %v483 = vmax.f32 %v445, 0.0
    %v484 = vmax.f32 %v448, 0.0
    %v485 = vmax.f32 %v453, 0.0
    %v486 = vmax.f32 %v456, 0.0
    %v487 = vmax.f32 %v461, 0.0
    %v488 = vmax.f32 %v464, 0.0
    %v489 = vmax.f32 %v469, 0.0
    %v490 = vmax.f32 %v472, 0.0
    %v491 = vpack.c.bf16 %v476, %v475
    %v492 = vpack.c.bf16 %v478, %v477
    %v493 = vpack.c.bf16 %v480, %v479
    %v494 = vpack.c.bf16 %v482, %v481
    %v495 = vpack.c.bf16 %v484, %v483
    %v496 = vpack.c.bf16 %v486, %v485
    %v497 = vpack.c.bf16 %v488, %v487
    %v498 = vpack.c.bf16 %v490, %v489
    %s499 = scalar_lea.vmem [#allocation7], 64
    %v500 = vld [vmem:[%s499] sm:$0xf]
    %v501 = vld [vmem:[%s499 + $0x4] sm:$0xf]
    %v502 = vld [vmem:[%s499 + $0x8] sm:$0xf]
    %v503 = vld [vmem:[%s499 + $0xc] sm:$0xf]
    %v504 = vld [vmem:[%s499 + $0x10] sm:$0xf]
    %v505 = vld [vmem:[%s499 + $0x14] sm:$0xf]
    %v506 = vld [vmem:[%s499 + $0x18] sm:$0xf]
    %v507 = vld [vmem:[%s499 + $0x1c] sm:$0xf]
    %v508 = vld [vmem:[%s499 + $0x20] sm:$0xf]
    %v509 = vld [vmem:[%s499 + $0x24] sm:$0xf]
    %v510 = vld [vmem:[%s499 + $0x28] sm:$0xf]
    %v511 = vld [vmem:[%s499 + $0x2c] sm:$0xf]
    %v512 = vld [vmem:[%s499 + $0x30] sm:$0xf]
    %v513 = vld [vmem:[%s499 + $0x34] sm:$0xf]
    %v514 = vld [vmem:[%s499 + $0x38] sm:$0xf]
    %v515 = vld [vmem:[%s499 + $0x3c] sm:$0xf]
    %v532 = vunpack.c.l.b16 %v500
    %v533 = vunpack.c.l.b16 %v501
    %v534 = vunpack.c.l.b16 %v502
    %v535 = vunpack.c.l.b16 %v503
    %v536 = vunpack.c.l.b16 %v504
    %v537 = vunpack.c.l.b16 %v505
    %v538 = vunpack.c.l.b16 %v506
    %v539 = vunpack.c.l.b16 %v507
    %v540 = vunpack.c.l.b16 %v508
    %v541 = vunpack.c.l.b16 %v509
    %v542 = vunpack.c.l.b16 %v510
    %v543 = vunpack.c.l.b16 %v511
    %v544 = vunpack.c.l.b16 %v512
    %v545 = vunpack.c.l.b16 %v513
    %v546 = vunpack.c.l.b16 %v514
    %v547 = vunpack.c.l.b16 %v515
    %v548 = vpack.c.b16 %v533, %v532
    %v549 = vpack.c.b16 %v535, %v534
    %v550 = vpack.c.b16 %v537, %v536
    %v551 = vpack.c.b16 %v539, %v538
    %v552 = vpack.c.b16 %v541, %v540
    %v553 = vpack.c.b16 %v543, %v542
    %v554 = vpack.c.b16 %v545, %v544
    %v555 = vpack.c.b16 %v547, %v546
    %564 = vmatprep.subr.bf16.mxu0 0
    %565 = vmatpush1.bf16.msra.mxu0 %v548
    %566 = vmatprep.subr.bf16.mxu0 0
    %567 = vmatpush1.bf16.msra.mxu0 %v549
    %568 = vmatprep.subr.bf16.mxu0 0
    %569 = vmatpush1.bf16.msra.mxu0 %v550
    %570 = vmatprep.subr.bf16.mxu0 0
    %571 = vmatpush1.bf16.msra.mxu0 %v551
    %572 = vmatprep.subr.bf16.mxu0 0
    %573 = vmatpush1.bf16.msra.mxu0 %v552
    %574 = vmatprep.subr.bf16.mxu0 0
    %575 = vmatpush1.bf16.msra.mxu0 %v553
    %576 = vmatprep.subr.bf16.mxu0 0
    %577 = vmatpush1.bf16.msra.mxu0 %v554
    %578 = vmatprep.subr.bf16.mxu0 0
    %579 = vmatpush1.bf16.msra.mxu0 %v555
    %580 = vmatprep.subr.bf16.mxu0 0
    %581 = vmatpush1.bf16.msra.mxu0 0
    %582 = vmatprep.subr.bf16.mxu0 0
    %583 = vmatpush1.bf16.msra.mxu0 0
    %584 = vmatprep.subr.bf16.mxu0 0
    %585 = vmatpush1.bf16.msra.mxu0 0
    %586 = vmatprep.subr.bf16.mxu0 0
    %587 = vmatpush1.bf16.msra.mxu0 0
    %588 = vmatprep.subr.bf16.mxu0 0
    %589 = vmatpush1.bf16.msra.mxu0 0
    %590 = vmatprep.subr.bf16.mxu0 0
    %591 = vmatpush1.bf16.msra.mxu0 0
    %592 = vmatprep.subr.bf16.mxu0 0
    %593 = vmatpush1.bf16.msra.mxu0 0
    %594 = vmatprep.subr.bf16.mxu0 0
    %595 = vmatpush1.bf16.msra.mxu0 0
    %596 = vmatprep.mubr.bf16.mxu0 0
    %597 = vmatmul.mubr.bf16.gmra.mrb[0].mxu0 %v491
    %v598 = vpop.f32.mrb[0].mxu0
    %v599 = vadd.f32 0.0, %v598
    %v600 = vpop.f32.mrb[0].mxu0
    %v601 = vpop.f32.mrb[0].mxu0
    %v602 = vadd.f32 0.0, %v601
    %v603 = vpop.f32.mrb[0].mxu0
    %604 = vmatprep.mubr.bf16.mxu0 0
    %605 = vmatmul.mubr.bf16.gmra.mrb[0].mxu0 %v492
    %v606 = vpop.f32.mrb[0].mxu0
    %v607 = vadd.f32 0.0, %v606
    %v608 = vpop.f32.mrb[0].mxu0
    %v609 = vpop.f32.mrb[0].mxu0
    %v610 = vadd.f32 0.0, %v609
    %v611 = vpop.f32.mrb[0].mxu0
    %612 = vmatprep.mubr.bf16.mxu0 0
    %613 = vmatmul.mubr.bf16.gmra.mrb[0].mxu0 %v493
    %v614 = vpop.f32.mrb[0].mxu0
    %v615 = vadd.f32 0.0, %v614
    %v616 = vpop.f32.mrb[0].mxu0
    %v617 = vpop.f32.mrb[0].mxu0
    %v618 = vadd.f32 0.0, %v617
    %v619 = vpop.f32.mrb[0].mxu0
    %620 = vmatprep.mubr.bf16.mxu0 0
    %621 = vmatmul.mubr.bf16.gmra.mrb[0].mxu0 %v494
    %v622 = vpop.f32.mrb[0].mxu0
    %v623 = vadd.f32 0.0, %v622
    %v624 = vpop.f32.mrb[0].mxu0
    %v625 = vpop.f32.mrb[0].mxu0
    %v626 = vadd.f32 0.0, %v625
    %v627 = vpop.f32.mrb[0].mxu0
    %628 = vmatprep.mubr.bf16.mxu0 0
    %629 = vmatmul.mubr.bf16.gmra.mrb[0].mxu0 %v495
    %v630 = vpop.f32.mrb[0].mxu0
    %v631 = vadd.f32 0.0, %v630
    %v632 = vpop.f32.mrb[0].mxu0
    %v633 = vpop.f32.mrb[0].mxu0
    %v634 = vadd.f32 0.0, %v633
    %v635 = vpop.f32.mrb[0].mxu0
    %636 = vmatprep.mubr.bf16.mxu0 0
    %637 = vmatmul.mubr.bf16.gmra.mrb[0].mxu0 %v496
    %v638 = vpop.f32.mrb[0].mxu0
    %v639 = vadd.f32 0.0, %v638
    %v640 = vpop.f32.mrb[0].mxu0
    %v641 = vpop.f32.mrb[0].mxu0
    %v642 = vadd.f32 0.0, %v641
    %v643 = vpop.f32.mrb[0].mxu0
    %644 = vmatprep.mubr.bf16.mxu0 0
    %645 = vmatmul.mubr.bf16.gmra.mrb[0].mxu0 %v497
    %v646 = vpop.f32.mrb[0].mxu0
    %v647 = vadd.f32 0.0, %v646
    %v648 = vpop.f32.mrb[0].mxu0
    %v649 = vpop.f32.mrb[0].mxu0
    %v650 = vadd.f32 0.0, %v649
    %v651 = vpop.f32.mrb[0].mxu0
    %652 = vmatprep.mubr.bf16.mxu0 0
    %653 = vmatmul.mubr.bf16.gmra.mrb[0].mxu0 %v498
    %v654 = vpop.f32.mrb[0].mxu0
    %v655 = vadd.f32 0.0, %v654
    %v656 = vpop.f32.mrb[0].mxu0
    %v657 = vpop.f32.mrb[0].mxu0
    %v658 = vadd.f32 0.0, %v657
    %v659 = vpop.f32.mrb[0].mxu0
    %660 = vdwg.mxu0
    %v661 = vpack.c.bf16 %v602, %v599
    %v662 = vpack.c.bf16 %v610, %v607
    %v663 = vpack.c.bf16 %v618, %v615
    %v664 = vpack.c.bf16 %v626, %v623
    %v665 = vpack.c.bf16 %v634, %v631
    %v666 = vpack.c.bf16 %v642, %v639
    %v667 = vpack.c.bf16 %v650, %v647
    %v668 = vpack.c.bf16 %v658, %v655
    %s669 = scalar_lea.vmem [#allocation8], 1
    %v670 = vld [vmem:[%s669] sm:$0x1]
    %v672 = vlaneseq
    %v673 = vshrl.u32 %v672, 7
    %v674 = vsub.s32 0, %v673
    %v675 = vrot.slane %v670, %v674
    %677 = vmatprep.subr.bf16.mxu0 0
    %678 = vmatpush1.bf16.msra.mxu0 %v661
    %679 = vmatprep.subr.bf16.mxu0 0
    %680 = vmatpush1.bf16.msra.mxu0 %v662
    %681 = vmatprep.subr.bf16.mxu0 0
    %682 = vmatpush1.bf16.msra.mxu0 %v663
    %683 = vmatprep.subr.bf16.mxu0 0
    %684 = vmatpush1.bf16.msra.mxu0 %v664
    %685 = vmatprep.subr.bf16.mxu0 0
    %686 = vmatpush1.bf16.msra.mxu0 %v665
    %687 = vmatprep.subr.bf16.mxu0 0
    %688 = vmatpush1.bf16.msra.mxu0 %v666
    %689 = vmatprep.subr.bf16.mxu0 0
    %690 = vmatpush1.bf16.msra.mxu0 %v667
    %691 = vmatprep.subr.bf16.mxu0 0
    %692 = vmatpush1.bf16.msra.mxu0 %v668
    %693 = vmatprep.subr.bf16.mxu0 0
    %694 = vmatpush1.bf16.msra.mxu0 0
    %695 = vmatprep.subr.bf16.mxu0 0
    %696 = vmatpush1.bf16.msra.mxu0 0
    %697 = vmatprep.subr.bf16.mxu0 0
    %698 = vmatpush1.bf16.msra.mxu0 0
    %699 = vmatprep.subr.bf16.mxu0 0
    %700 = vmatpush1.bf16.msra.mxu0 0
    %701 = vmatprep.subr.bf16.mxu0 0
    %702 = vmatpush1.bf16.msra.mxu0 0
    %703 = vmatprep.subr.bf16.mxu0 0
    %704 = vmatpush1.bf16.msra.mxu0 0
    %705 = vmatprep.subr.bf16.mxu0 0
    %706 = vmatpush1.bf16.msra.mxu0 0
    %707 = vmatprep.subr.bf16.mxu0 0
    %708 = vmatpush1.bf16.msra.mxu0 0
    %709 = vmatprep.mubr.bf16.mxu0 0
    %710 = vmatmul.mubr.bf16.gmra.mrb[0].mxu0 %v362
    %v711 = vpop.f32.mrb[0].mxu0
    %v712 = vadd.f32 %v675, %v711
    %v713 = vpop.f32.mrb[0].mxu0
    %v714 = vpop.f32.mrb[0].mxu0
    %v715 = vadd.f32 %v675, %v714
    %v716 = vpop.f32.mrb[0].mxu0
    %717 = vmatprep.mubr.bf16.mxu0 0
    %718 = vmatmul.mubr.bf16.gmra.mrb[0].mxu0 %v363
    %v719 = vpop.f32.mrb[0].mxu0
    %v720 = vadd.f32 %v675, %v719
    %v721 = vpop.f32.mrb[0].mxu0
    %v722 = vpop.f32.mrb[0].mxu0
    %v723 = vadd.f32 %v675, %v722
    %v724 = vpop.f32.mrb[0].mxu0
    %725 = vmatprep.mubr.bf16.mxu0 0
    %726 = vmatmul.mubr.bf16.gmra.mrb[0].mxu0 %v364
    %v727 = vpop.f32.mrb[0].mxu0
    %v728 = vadd.f32 %v675, %v727
    %v729 = vpop.f32.mrb[0].mxu0
    %v730 = vpop.f32.mrb[0].mxu0
    %v731 = vadd.f32 %v675, %v730
    %v732 = vpop.f32.mrb[0].mxu0
    %733 = vmatprep.mubr.bf16.mxu0 0
    %734 = vmatmul.mubr.bf16.gmra.mrb[0].mxu0 %v365
    %v735 = vpop.f32.mrb[0].mxu0
    %v736 = vadd.f32 %v675, %v735
    %v737 = vpop.f32.mrb[0].mxu0
    %v738 = vpop.f32.mrb[0].mxu0
    %v739 = vadd.f32 %v675, %v738
    %v740 = vpop.f32.mrb[0].mxu0
    %741 = vmatprep.mubr.bf16.mxu0 0
    %742 = vmatmul.mubr.bf16.gmra.mrb[0].mxu0 %v366
    %v743 = vpop.f32.mrb[0].mxu0
    %v744 = vadd.f32 %v675, %v743
    %v745 = vpop.f32.mrb[0].mxu0
    %v746 = vpop.f32.mrb[0].mxu0
    %v747 = vadd.f32 %v675, %v746
    %v748 = vpop.f32.mrb[0].mxu0
    %749 = vmatprep.mubr.bf16.mxu0 0
    %750 = vmatmul.mubr.bf16.gmra.mrb[0].mxu0 %v367
    %v751 = vpop.f32.mrb[0].mxu0
    %v752 = vadd.f32 %v675, %v751
    %v753 = vpop.f32.mrb[0].mxu0
    %v754 = vpop.f32.mrb[0].mxu0
    %v755 = vadd.f32 %v675, %v754
    %v756 = vpop.f32.mrb[0].mxu0
    %757 = vmatprep.mubr.bf16.mxu0 0
    %758 = vmatmul.mubr.bf16.gmra.mrb[0].mxu0 %v368
    %v759 = vpop.f32.mrb[0].mxu0
    %v760 = vadd.f32 %v675, %v759
    %v761 = vpop.f32.mrb[0].mxu0
    %v762 = vpop.f32.mrb[0].mxu0
    %v763 = vadd.f32 %v675, %v762
    %v764 = vpop.f32.mrb[0].mxu0
    %765 = vmatprep.mubr.bf16.mxu0 0
    %766 = vmatmul.mubr.bf16.gmra.mrb[0].mxu0 %v369
    %v767 = vpop.f32.mrb[0].mxu0
    %v768 = vadd.f32 %v675, %v767
    %v769 = vpop.f32.mrb[0].mxu0
    %v770 = vpop.f32.mrb[0].mxu0
    %v771 = vadd.f32 %v675, %v770
    %v772 = vpop.f32.mrb[0].mxu0
    %773 = vdwg.mxu0
    %v774 = vmax.f32 %v712, 0.0
    %v775 = vmax.f32 %v715, 0.0
    %v776 = vmax.f32 %v720, 0.0
    %v777 = vmax.f32 %v723, 0.0
    %v778 = vmax.f32 %v728, 0.0
    %v779 = vmax.f32 %v731, 0.0
    %v780 = vmax.f32 %v736, 0.0
    %v781 = vmax.f32 %v739, 0.0
    %v782 = vmax.f32 %v744, 0.0
    %v783 = vmax.f32 %v747, 0.0
    %v784 = vmax.f32 %v752, 0.0
    %v785 = vmax.f32 %v755, 0.0
    %v786 = vmax.f32 %v760, 0.0
    %v787 = vmax.f32 %v763, 0.0
    %v788 = vmax.f32 %v768, 0.0
    %v789 = vmax.f32 %v771, 0.0
    %v790 = vpack.c.bf16 %v775, %v774
    %v791 = vpack.c.bf16 %v777, %v776
    %v792 = vpack.c.bf16 %v779, %v778
    %v793 = vpack.c.bf16 %v781, %v780
    %v794 = vpack.c.bf16 %v783, %v782
    %v795 = vpack.c.bf16 %v785, %v784
    %v796 = vpack.c.bf16 %v787, %v786
    %v797 = vpack.c.bf16 %v789, %v788
    %s798 = scalar_lea.vmem [#allocation7], 128
    %v799 = vld [vmem:[%s798] sm:$0xf]
    %v800 = vld [vmem:[%s798 + $0x4] sm:$0xf]
    %v801 = vld [vmem:[%s798 + $0x8] sm:$0xf]
    %v802 = vld [vmem:[%s798 + $0xc] sm:$0xf]
    %v803 = vld [vmem:[%s798 + $0x10] sm:$0xf]
    %v804 = vld [vmem:[%s798 + $0x14] sm:$0xf]
    %v805 = vld [vmem:[%s798 + $0x18] sm:$0xf]
    %v806 = vld [vmem:[%s798 + $0x1c] sm:$0xf]
    %v807 = vld [vmem:[%s798 + $0x20] sm:$0xf]
    %v808 = vld [vmem:[%s798 + $0x24] sm:$0xf]
    %v809 = vld [vmem:[%s798 + $0x28] sm:$0xf]
    %v810 = vld [vmem:[%s798 + $0x2c] sm:$0xf]
    %v811 = vld [vmem:[%s798 + $0x30] sm:$0xf]
    %v812 = vld [vmem:[%s798 + $0x34] sm:$0xf]
    %v813 = vld [vmem:[%s798 + $0x38] sm:$0xf]
    %v814 = vld [vmem:[%s798 + $0x3c] sm:$0xf]
    %v831 = vunpack.c.l.b16 %v799
    %v832 = vunpack.c.l.b16 %v800
    %v833 = vunpack.c.l.b16 %v801
    %v834 = vunpack.c.l.b16 %v802
    %v835 = vunpack.c.l.b16 %v803
    %v836 = vunpack.c.l.b16 %v804
    %v837 = vunpack.c.l.b16 %v805
    %v838 = vunpack.c.l.b16 %v806
    %v839 = vunpack.c.l.b16 %v807
    %v840 = vunpack.c.l.b16 %v808
    %v841 = vunpack.c.l.b16 %v809
    %v842 = vunpack.c.l.b16 %v810
    %v843 = vunpack.c.l.b16 %v811
    %v844 = vunpack.c.l.b16 %v812
    %v845 = vunpack.c.l.b16 %v813
    %v846 = vunpack.c.l.b16 %v814
    %v847 = vpack.c.b16 %v832, %v831
    %v848 = vpack.c.b16 %v834, %v833
    %v849 = vpack.c.b16 %v836, %v835
    %v850 = vpack.c.b16 %v838, %v837
    %v851 = vpack.c.b16 %v840, %v839
    %v852 = vpack.c.b16 %v842, %v841
    %v853 = vpack.c.b16 %v844, %v843
    %v854 = vpack.c.b16 %v846, %v845
    %863 = vmatprep.subr.bf16.mxu0 0
    %864 = vmatpush1.bf16.msra.mxu0 %v847
    %865 = vmatprep.subr.bf16.mxu0 0
    %866 = vmatpush1.bf16.msra.mxu0 %v848
    %867 = vmatprep.subr.bf16.mxu0 0
    %868 = vmatpush1.bf16.msra.mxu0 %v849
    %869 = vmatprep.subr.bf16.mxu0 0
    %870 = vmatpush1.bf16.msra.mxu0 %v850
    %871 = vmatprep.subr.bf16.mxu0 0
    %872 = vmatpush1.bf16.msra.mxu0 %v851
    %873 = vmatprep.subr.bf16.mxu0 0
    %874 = vmatpush1.bf16.msra.mxu0 %v852
    %875 = vmatprep.subr.bf16.mxu0 0
    %876 = vmatpush1.bf16.msra.mxu0 %v853
    %877 = vmatprep.subr.bf16.mxu0 0
    %878 = vmatpush1.bf16.msra.mxu0 %v854
    %879 = vmatprep.subr.bf16.mxu0 0
    %880 = vmatpush1.bf16.msra.mxu0 0
    %881 = vmatprep.subr.bf16.mxu0 0
    %882 = vmatpush1.bf16.msra.mxu0 0
    %883 = vmatprep.subr.bf16.mxu0 0
    %884 = vmatpush1.bf16.msra.mxu0 0
    %885 = vmatprep.subr.bf16.mxu0 0
    %886 = vmatpush1.bf16.msra.mxu0 0
    %887 = vmatprep.subr.bf16.mxu0 0
    %888 = vmatpush1.bf16.msra.mxu0 0
    %889 = vmatprep.subr.bf16.mxu0 0
    %890 = vmatpush1.bf16.msra.mxu0 0
    %891 = vmatprep.subr.bf16.mxu0 0
    %892 = vmatpush1.bf16.msra.mxu0 0
    %893 = vmatprep.subr.bf16.mxu0 0
    %894 = vmatpush1.bf16.msra.mxu0 0
    %895 = vmatprep.mubr.bf16.mxu0 0
    %896 = vmatmul.mubr.bf16.gmra.mrb[0].mxu0 %v790
    %v897 = vpop.f32.mrb[0].mxu0
    %v898 = vadd.f32 0.0, %v897
    %v899 = vpop.f32.mrb[0].mxu0
    %v900 = vpop.f32.mrb[0].mxu0
    %v901 = vadd.f32 0.0, %v900
    %v902 = vpop.f32.mrb[0].mxu0
    %903 = vmatprep.mubr.bf16.mxu0 0
    %904 = vmatmul.mubr.bf16.gmra.mrb[0].mxu0 %v791
    %v905 = vpop.f32.mrb[0].mxu0
    %v906 = vadd.f32 0.0, %v905
    %v907 = vpop.f32.mrb[0].mxu0
    %v908 = vpop.f32.mrb[0].mxu0
    %v909 = vadd.f32 0.0, %v908
    %v910 = vpop.f32.mrb[0].mxu0
    %911 = vmatprep.mubr.bf16.mxu0 0
    %912 = vmatmul.mubr.bf16.gmra.mrb[0].mxu0 %v792
    %v913 = vpop.f32.mrb[0].mxu0
    %v914 = vadd.f32 0.0, %v913
    %v915 = vpop.f32.mrb[0].mxu0
    %v916 = vpop.f32.mrb[0].mxu0
    %v917 = vadd.f32 0.0, %v916
    %v918 = vpop.f32.mrb[0].mxu0
    %919 = vmatprep.mubr.bf16.mxu0 0
    %920 = vmatmul.mubr.bf16.gmra.mrb[0].mxu0 %v793
    %v921 = vpop.f32.mrb[0].mxu0
    %v922 = vadd.f32 0.0, %v921
    %v923 = vpop.f32.mrb[0].mxu0
    %v924 = vpop.f32.mrb[0].mxu0
    %v925 = vadd.f32 0.0, %v924
    %v926 = vpop.f32.mrb[0].mxu0
    %927 = vmatprep.mubr.bf16.mxu0 0
    %928 = vmatmul.mubr.bf16.gmra.mrb[0].mxu0 %v794
    %v929 = vpop.f32.mrb[0].mxu0
    %v930 = vadd.f32 0.0, %v929
    %v931 = vpop.f32.mrb[0].mxu0
    %v932 = vpop.f32.mrb[0].mxu0
    %v933 = vadd.f32 0.0, %v932
    %v934 = vpop.f32.mrb[0].mxu0
    %935 = vmatprep.mubr.bf16.mxu0 0
    %936 = vmatmul.mubr.bf16.gmra.mrb[0].mxu0 %v795
    %v937 = vpop.f32.mrb[0].mxu0
    %v938 = vadd.f32 0.0, %v937
    %v939 = vpop.f32.mrb[0].mxu0
    %v940 = vpop.f32.mrb[0].mxu0
    %v941 = vadd.f32 0.0, %v940
    %v942 = vpop.f32.mrb[0].mxu0
    %943 = vmatprep.mubr.bf16.mxu0 0
    %944 = vmatmul.mubr.bf16.gmra.mrb[0].mxu0 %v796
    %v945 = vpop.f32.mrb[0].mxu0
    %v946 = vadd.f32 0.0, %v945
    %v947 = vpop.f32.mrb[0].mxu0
    %v948 = vpop.f32.mrb[0].mxu0
    %v949 = vadd.f32 0.0, %v948
    %v950 = vpop.f32.mrb[0].mxu0
    %951 = vmatprep.mubr.bf16.mxu0 0
    %952 = vmatmul.mubr.bf16.gmra.mrb[0].mxu0 %v797
    %v953 = vpop.f32.mrb[0].mxu0
    %v954 = vadd.f32 0.0, %v953
    %v955 = vpop.f32.mrb[0].mxu0
    %v956 = vpop.f32.mrb[0].mxu0
    %v957 = vadd.f32 0.0, %v956
    %v958 = vpop.f32.mrb[0].mxu0
    %959 = vdwg.mxu0
    %v960 = vpack.c.bf16 %v901, %v898
    %v961 = vpack.c.bf16 %v909, %v906
    %v962 = vpack.c.bf16 %v917, %v914
    %v963 = vpack.c.bf16 %v925, %v922
    %v964 = vpack.c.bf16 %v933, %v930
    %v965 = vpack.c.bf16 %v941, %v938
    %v966 = vpack.c.bf16 %v949, %v946
    %v967 = vpack.c.bf16 %v957, %v954
    %s968 = scalar_lea.vmem [#allocation8], 2
    %v969 = vld [vmem:[%s968] sm:$0x1]
    %v971 = vlaneseq
    %v972 = vshrl.u32 %v971, 7
    %v973 = vsub.s32 0, %v972
    %v974 = vrot.slane %v969, %v973
    %976 = vmatprep.subr.bf16.mxu0 0
    %977 = vmatpush1.bf16.msra.mxu0 %v960
    %978 = vmatprep.subr.bf16.mxu0 0
    %979 = vmatpush1.bf16.msra.mxu0 %v961
    %980 = vmatprep.subr.bf16.mxu0 0
    %981 = vmatpush1.bf16.msra.mxu0 %v962
    %982 = vmatprep.subr.bf16.mxu0 0
    %983 = vmatpush1.bf16.msra.mxu0 %v963
    %984 = vmatprep.subr.bf16.mxu0 0
    %985 = vmatpush1.bf16.msra.mxu0 %v964
    %986 = vmatprep.subr.bf16.mxu0 0
    %987 = vmatpush1.bf16.msra.mxu0 %v965
    %988 = vmatprep.subr.bf16.mxu0 0
    %989 = vmatpush1.bf16.msra.mxu0 %v966
    %990 = vmatprep.subr.bf16.mxu0 0
    %991 = vmatpush1.bf16.msra.mxu0 %v967
    %992 = vmatprep.subr.bf16.mxu0 0
    %993 = vmatpush1.bf16.msra.mxu0 0
    %994 = vmatprep.subr.bf16.mxu0 0
    %995 = vmatpush1.bf16.msra.mxu0 0
    %996 = vmatprep.subr.bf16.mxu0 0
    %997 = vmatpush1.bf16.msra.mxu0 0
    %998 = vmatprep.subr.bf16.mxu0 0
    %999 = vmatpush1.bf16.msra.mxu0 0
    %1000 = vmatprep.subr.bf16.mxu0 0
    %1001 = vmatpush1.bf16.msra.mxu0 0
    %1002 = vmatprep.subr.bf16.mxu0 0
    %1003 = vmatpush1.bf16.msra.mxu0 0
    %1004 = vmatprep.subr.bf16.mxu0 0
    %1005 = vmatpush1.bf16.msra.mxu0 0
    %1006 = vmatprep.subr.bf16.mxu0 0
    %1007 = vmatpush1.bf16.msra.mxu0 0
    %1008 = vmatprep.mubr.bf16.mxu0 0
    %1009 = vmatmul.mubr.bf16.gmra.mrb[0].mxu0 %v362
    %v1010 = vpop.f32.mrb[0].mxu0
    %v1011 = vadd.f32 %v974, %v1010
    %v1012 = vpop.f32.mrb[0].mxu0
    %v1013 = vpop.f32.mrb[0].mxu0
    %v1014 = vadd.f32 %v974, %v1013
    %v1015 = vpop.f32.mrb[0].mxu0
    %1016 = vmatprep.mubr.bf16.mxu0 0
    %1017 = vmatmul.mubr.bf16.gmra.mrb[0].mxu0 %v363
    %v1018 = vpop.f32.mrb[0].mxu0
    %v1019 = vadd.f32 %v974, %v1018
    %v1020 = vpop.f32.mrb[0].mxu0
    %v1021 = vpop.f32.mrb[0].mxu0
    %v1022 = vadd.f32 %v974, %v1021
    %v1023 = vpop.f32.mrb[0].mxu0
    %1024 = vmatprep.mubr.bf16.mxu0 0
    %1025 = vmatmul.mubr.bf16.gmra.mrb[0].mxu0 %v364
    %v1026 = vpop.f32.mrb[0].mxu0
    %v1027 = vadd.f32 %v974, %v1026
    %v1028 = vpop.f32.mrb[0].mxu0
    %v1029 = vpop.f32.mrb[0].mxu0
    %v1030 = vadd.f32 %v974, %v1029
    %v1031 = vpop.f32.mrb[0].mxu0
    %1032 = vmatprep.mubr.bf16.mxu0 0
    %1033 = vmatmul.mubr.bf16.gmra.mrb[0].mxu0 %v365
    %v1034 = vpop.f32.mrb[0].mxu0
    %v1035 = vadd.f32 %v974, %v1034
    %v1036 = vpop.f32.mrb[0].mxu0
    %v1037 = vpop.f32.mrb[0].mxu0
    %v1038 = vadd.f32 %v974, %v1037
    %v1039 = vpop.f32.mrb[0].mxu0
    %1040 = vmatprep.mubr.bf16.mxu0 0
    %1041 = vmatmul.mubr.bf16.gmra.mrb[0].mxu0 %v366
    %v1042 = vpop.f32.mrb[0].mxu0
    %v1043 = vadd.f32 %v974, %v1042
    %v1044 = vpop.f32.mrb[0].mxu0
    %v1045 = vpop.f32.mrb[0].mxu0
    %v1046 = vadd.f32 %v974, %v1045
    %v1047 = vpop.f32.mrb[0].mxu0
    %1048 = vmatprep.mubr.bf16.mxu0 0
    %1049 = vmatmul.mubr.bf16.gmra.mrb[0].mxu0 %v367
    %v1050 = vpop.f32.mrb[0].mxu0
    %v1051 = vadd.f32 %v974, %v1050
    %v1052 = vpop.f32.mrb[0].mxu0
    %v1053 = vpop.f32.mrb[0].mxu0
    %v1054 = vadd.f32 %v974, %v1053
    %v1055 = vpop.f32.mrb[0].mxu0
    %1056 = vmatprep.mubr.bf16.mxu0 0
    %1057 = vmatmul.mubr.bf16.gmra.mrb[0].mxu0 %v368
    %v1058 = vpop.f32.mrb[0].mxu0
    %v1059 = vadd.f32 %v974, %v1058
    %v1060 = vpop.f32.mrb[0].mxu0
    %v1061 = vpop.f32.mrb[0].mxu0
    %v1062 = vadd.f32 %v974, %v1061
    %v1063 = vpop.f32.mrb[0].mxu0
    %1064 = vmatprep.mubr.bf16.mxu0 0
    %1065 = vmatmul.mubr.bf16.gmra.mrb[0].mxu0 %v369
    %v1066 = vpop.f32.mrb[0].mxu0
    %v1067 = vadd.f32 %v974, %v1066
    %v1068 = vpop.f32.mrb[0].mxu0
    %v1069 = vpop.f32.mrb[0].mxu0
    %v1070 = vadd.f32 %v974, %v1069
    %v1071 = vpop.f32.mrb[0].mxu0
    %1072 = vdwg.mxu0
    %v1073 = vmax.f32 %v1011, 0.0
    %v1074 = vmax.f32 %v1014, 0.0
    %v1075 = vmax.f32 %v1019, 0.0
    %v1076 = vmax.f32 %v1022, 0.0
    %v1077 = vmax.f32 %v1027, 0.0
    %v1078 = vmax.f32 %v1030, 0.0
    %v1079 = vmax.f32 %v1035, 0.0
    %v1080 = vmax.f32 %v1038, 0.0
    %v1081 = vmax.f32 %v1043, 0.0
    %v1082 = vmax.f32 %v1046, 0.0
    %v1083 = vmax.f32 %v1051, 0.0
    %v1084 = vmax.f32 %v1054, 0.0
    %v1085 = vmax.f32 %v1059, 0.0
    %v1086 = vmax.f32 %v1062, 0.0
    %v1087 = vmax.f32 %v1067, 0.0
    %v1088 = vmax.f32 %v1070, 0.0
    %1089 = vst [vmem:[#allocation10] sm:$0xff] %v1073
    %1090 = vst [vmem:[#allocation10 + $0x8] sm:$0xff] %v1074
    %1091 = vst [vmem:[#allocation10 + $0x10] sm:$0xff] %v1075
    %1092 = vst [vmem:[#allocation10 + $0x18] sm:$0xff] %v1076
    %1093 = vst [vmem:[#allocation10 + $0x20] sm:$0xff] %v1077
    %1094 = vst [vmem:[#allocation10 + $0x28] sm:$0xff] %v1078
    %1095 = vst [vmem:[#allocation10 + $0x30] sm:$0xff] %v1079
    %1096 = vst [vmem:[#allocation10 + $0x38] sm:$0xff] %v1080
    %1097 = vst [vmem:[#allocation10 + $0x40] sm:$0xff] %v1081
    %1098 = vst [vmem:[#allocation10 + $0x48] sm:$0xff] %v1082
    %1099 = vst [vmem:[#allocation10 + $0x50] sm:$0xff] %v1083
    %1100 = vst [vmem:[#allocation10 + $0x58] sm:$0xff] %v1084
    %1101 = vst [vmem:[#allocation10 + $0x60] sm:$0xff] %v1085
    %1102 = vst [vmem:[#allocation10 + $0x68] sm:$0xff] %v1086
    %1103 = vst [vmem:[#allocation10 + $0x70] sm:$0xff] %v1087
    %1104 = vst [vmem:[#allocation10 + $0x78] sm:$0xff] %v1088
    // Predicated region
    $region34: #{tpu_custom_call.1} parent=1 // pred_check
      _
    $region35: #{tpu_custom_call.1} parent=1 // pred_check_branch
      %1106 = sbr.rel (0) target = $region37
    $region36: #{tpu_custom_call.1} parent=1 // pred_region
      %s1108 = ssub.s32 2048, 2048
      %1109 = vsyncadd [#allocation4], %s1108
      %s1110 = sshll.u32 [#allocation10], 4
      %s1111 = int_to_ptr.vmem [resolvable:$true] %s1110
      %1116 = dma.vmem_to_hbm [thread:$0]  %s1111, 2048, %s4, [#allocation4], 128, 128, 8
    $region37: #{tpu_custom_call.1} parent=1 // pred_fallthru
      _
    // Predicated region
    $region38: #{tpu_custom_call.1} parent=1 // pred_check
      _
    $region39: #{tpu_custom_call.1} parent=1 // pred_check_branch
      %1118 = sbr.rel (0) target = $region41
    $region40: #{tpu_custom_call.1} parent=1 // pred_region
      %1119 = dma.done [#allocation4], 2048
    $region41: #{tpu_custom_call.1} parent=1 // pred_fallthru
      _
    %1120 = vsyncpa [#allocation3], 1
    %1121 = vsyncpa [#allocation6], 1
    %1122 = vsyncpa [#allocation9], 1
    %1123 = vsyncpa [#allocation4], 1

</llo_original>
